<compile_context>
chip_gen: v7x
topology: tpu7x:2x2x1
jax: 0.10.0
libtpu: 0.0.40
codegen_flags: <defaults>
</compile_context>

<pallas_src>
import functools

import jax
import jax.numpy as jnp
from jax.experimental import pallas as pl
from jax.experimental.pallas import tpu as pltpu

# ------------------------- small config (real model in comments) -------------------------
H_IMG = W_IMG = 32          # 224 in the real model
PATCH = 8                   # Conv2d(kernel=8, stride=8) patch embed
GH, GW = H_IMG // PATCH, W_IMG // PATCH
TOKENS = GH * GW            # 28*28 = 784 in the real model
T_DIM = 16                  # teacher token dim (384 real)
C_IN = 3 * T_DIM            # 3*384 = 1152 real
D = 64                      # student token dim (768 real)
HEADS = 4                   # 6 real
HEAD_DIM = D // HEADS
DEPTH = 4                   # 12 real; len==4 branch of the feature-cat is exercised
MLP_DIM = 4 * D

FP = jnp.float32
BF = jnp.bfloat16
LN_EPS = 1e-5
# NOTE: re-derive for real sizes / generation (v7x has only 64 MiB VMEM per TC).
VMEM_LIMIT = 32 * 1024 * 1024


# ----------------------------------- Pallas kernels --------------------------------------
def _matmul_kernel(act, has_bias, has_res, *refs):
    """Tiled matmul with f32 accumulator; bias / GELU / residual fused in the epilogue."""
    idx = 0
    x_ref = refs[idx]; idx += 1
    w_ref = refs[idx]; idx += 1
    b_ref = None
    r_ref = None
    if has_bias:
        b_ref = refs[idx]; idx += 1
    if has_res:
        r_ref = refs[idx]; idx += 1
    o_ref, acc_ref = refs[idx], refs[idx + 1]

    @pl.when(pl.program_id(2) == 0)
    def _():
        acc_ref[...] = jnp.zeros_like(acc_ref)

    acc_ref[...] += jnp.dot(x_ref[...], w_ref[...], preferred_element_type=jnp.float32)

    @pl.when(pl.program_id(2) == pl.num_programs(2) - 1)
    def _():
        y = acc_ref[...]
        if has_bias:
            y = y + b_ref[...].astype(jnp.float32)
        if act == "gelu":
            # TODO(synk): torch nn.GELU uses exact erf; tanh approximation used here.
            y = jax.nn.gelu(y, approximate=True)
        if has_res:
            y = y + r_ref[...].astype(jnp.float32)
        o_ref[...] = y.astype(o_ref.dtype)


def _fit(dim, want, align):
    """Pick a tile: `want` if it tiles `dim` and respects (8,128) alignment, else full dim."""
    if want <= dim and dim % want == 0 and want % align == 0:
        return want
    return dim


def tiled_matmul(x, w, bias=None, act=None, residual=None, out_dtype=None,
                 tm=256, tn=256, tk=512):
    """x:(M,K) @ w:(K,N) [+ bias][, act][, + residual] -> (M,N); MXU path, f32 accum."""
    M, K = x.shape
    N = w.shape[1]
    out_dtype = out_dtype or x.dtype
    tm = _fit(M, tm, 8)
    tn = _fit(N, tn, 128)
    tk = _fit(K, tk, 128)
    grid = (M // tm, N // tn, K // tk)

    in_specs = [pl.BlockSpec((tm, tk), lambda i, j, k: (i, k)),
                pl.BlockSpec((tk, tn), lambda i, j, k: (k, j))]
    args = [x, w]
    if bias is not None:
        in_specs.append(pl.BlockSpec((1, tn), lambda i, j, k: (0, j)))
        args.append(bias.reshape(1, N))
    if residual is not None:
        in_specs.append(pl.BlockSpec((tm, tn), lambda i, j, k: (i, j)))
        args.append(residual)

    return pl.pallas_call(
        functools.partial(_matmul_kernel, act, bias is not None, residual is not None),
        out_shape=jax.ShapeDtypeStruct((M, N), out_dtype),
        grid=grid,
        in_specs=in_specs,
        out_specs=pl.BlockSpec((tm, tn), lambda i, j, k: (i, j)),
        scratch_shapes=[pltpu.VMEM((tm, tn), jnp.float32)],
        compiler_params=pltpu.CompilerParams(
            dimension_semantics=("parallel", "parallel", "arbitrary"),
            vmem_limit_bytes=VMEM_LIMIT),
    )(*args)


def _ln_linear_kernel(act, eps, x_ref, g_ref, bt_ref, w_ref, b_ref, o_ref):
    """Fused LayerNorm (f32 stats) + linear (bf16 MXU, f32 accum) [+ GELU]."""
    x = x_ref[...].astype(jnp.float32)
    mu = jnp.mean(x, axis=-1, keepdims=True)
    var = jnp.mean(jnp.square(x - mu), axis=-1, keepdims=True)
    h = (x - mu) * jax.lax.rsqrt(var + eps)
    h = h * g_ref[...] + bt_ref[...]
    y = jnp.dot(h.astype(w_ref.dtype), w_ref[...], preferred_element_type=jnp.float32)
    y = y + b_ref[...].astype(jnp.float32)
    if act == "gelu":
        y = jax.nn.gelu(y, approximate=True)
    o_ref[...] = y.astype(o_ref.dtype)


def pallas_ln_linear(x, g, bt, w, b, act=None, out_dtype=None):
    M, K = x.shape
    N = w.shape[1]
    out_dtype = out_dtype or x.dtype
    return pl.pallas_call(
        functools.partial(_ln_linear_kernel, act, LN_EPS),
        out_shape=jax.ShapeDtypeStruct((M, N), out_dtype),
        grid=(1,),
        in_specs=[pl.BlockSpec((M, K), lambda i: (0, 0)),
                  pl.BlockSpec((1, K), lambda i: (0, 0)),
                  pl.BlockSpec((1, K), lambda i: (0, 0)),
                  pl.BlockSpec((K, N), lambda i: (0, 0)),
                  pl.BlockSpec((1, N), lambda i: (0, 0))],
        out_specs=pl.BlockSpec((M, N), lambda i: (0, 0)),
        compiler_params=pltpu.CompilerParams(
            dimension_semantics=("arbitrary",), vmem_limit_bytes=VMEM_LIMIT),
    )(x, g.reshape(1, K), bt.reshape(1, K), w, b.reshape(1, N))


def _ln_mlp_kernel(eps, x_ref, g_ref, bt_ref, w1_ref, b1_ref, w2_ref, b2_ref, o_ref):
    """Fused LN2 + fc1(GELU) + fc2 + residual (the whole ViT MLP sub-block)."""
    x = x_ref[...].astype(jnp.float32)
    mu = jnp.mean(x, axis=-1, keepdims=True)
    var = jnp.mean(jnp.square(x - mu), axis=-1, keepdims=True)
    h = (x - mu) * jax.lax.rsqrt(var + eps)
    h = h * g_ref[...] + bt_ref[...]
    u = jnp.dot(h.astype(w1_ref.dtype), w1_ref[...], preferred_element_type=jnp.float32)
    u = jax.nn.gelu(u + b1_ref[...].astype(jnp.float32), approximate=True)
    v = jnp.dot(u.astype(w2_ref.dtype), w2_ref[...], preferred_element_type=jnp.float32)
    o_ref[...] = (x + v + b2_ref[...].astype(jnp.float32)).astype(o_ref.dtype)


def pallas_ln_mlp(x, g, bt, w1, b1, w2, b2):
    M, Dd = x.shape
    Hd = w1.shape[1]
    return pl.pallas_call(
        functools.partial(_ln_mlp_kernel, LN_EPS),
        out_shape=jax.ShapeDtypeStruct((M, Dd), x.dtype),
        grid=(1,),
        in_specs=[pl.BlockSpec((M, Dd), lambda i: (0, 0)),
                  pl.BlockSpec((1, Dd), lambda i: (0, 0)),
                  pl.BlockSpec((1, Dd), lambda i: (0, 0)),
                  pl.BlockSpec((Dd, Hd), lambda i: (0, 0)),
                  pl.BlockSpec((1, Hd), lambda i: (0, 0)),
                  pl.BlockSpec((Hd, Dd), lambda i: (0, 0)),
                  pl.BlockSpec((1, Dd), lambda i: (0, 0))],
        out_specs=pl.BlockSpec((M, Dd), lambda i: (0, 0)),
        compiler_params=pltpu.CompilerParams(
            dimension_semantics=("arbitrary",), vmem_limit_bytes=VMEM_LIMIT),
    )(x, g.reshape(1, Dd), bt.reshape(1, Dd), w1, b1.reshape(1, Hd), w2, b2.reshape(1, Dd))


def _layernorm_kernel(eps, x_ref, g_ref, b_ref, o_ref):
    x = x_ref[...].astype(jnp.float32)
    mu = jnp.mean(x, axis=-1, keepdims=True)
    var = jnp.mean(jnp.square(x - mu), axis=-1, keepdims=True)
    y = (x - mu) * jax.lax.rsqrt(var + eps)
    o_ref[...] = (y * g_ref[...] + b_ref[...]).astype(o_ref.dtype)


def pallas_layernorm(x, gamma, beta, out_dtype=None):
    M, Dd = x.shape
    out_dtype = out_dtype or x.dtype
    return pl.pallas_call(
        functools.partial(_layernorm_kernel, LN_EPS),
        out_shape=jax.ShapeDtypeStruct((M, Dd), out_dtype),
        grid=(1,),
        in_specs=[pl.BlockSpec((M, Dd), lambda i: (0, 0)),
                  pl.BlockSpec((1, Dd), lambda i: (0, 0)),
                  pl.BlockSpec((1, Dd), lambda i: (0, 0))],
        out_specs=pl.BlockSpec((M, Dd), lambda i: (0, 0)),
        compiler_params=pltpu.CompilerParams(
            dimension_semantics=("arbitrary",), vmem_limit_bytes=VMEM_LIMIT),
    )(x, gamma.reshape(1, Dd), beta.reshape(1, Dd))


def _attn_kernel(scale, q_ref, k_ref, v_ref, o_ref):
    q = q_ref[0]
    k = k_ref[0]
    v = v_ref[0]
    # contract last dims directly (no explicit K transpose / XLU copy)
    s = jax.lax.dot_general(q, k, (((1,), (1,)), ((), ())),
                            preferred_element_type=jnp.float32) * scale
    s = s - jnp.max(s, axis=-1, keepdims=True)
    p = jnp.exp(s)
    denom = jnp.sum(p, axis=-1, keepdims=True)
    p = p * pl.reciprocal(denom, approx=True)         # EUP vrcp, frees VALU cycles
    o = jnp.dot(p.astype(v.dtype), v, preferred_element_type=jnp.float32)
    o_ref[0] = o.astype(o_ref.dtype)


def pallas_attention(q, k, v, scale):
    """q,k,v: (HEADS, T, hd) -> (HEADS, T, hd); per-head softmax attention.

    TODO(synk): at real-model T=784, tile the query axis (flash-style online softmax)
    so K/V DMA pipelines against the score matmul and the grid spans both v7x TCs.
    """
    H, T, hd = q.shape
    spec = pl.BlockSpec((1, T, hd), lambda h: (h, 0, 0))
    return pl.pallas_call(
        functools.partial(_attn_kernel, scale),
        out_shape=jax.ShapeDtypeStruct((H, T, hd), q.dtype),
        grid=(H,),
        in_specs=[spec, spec, spec],
        out_specs=spec,
        compiler_params=pltpu.CompilerParams(
            dimension_semantics=("parallel",), vmem_limit_bytes=VMEM_LIMIT),
    )(q, k, v)


# ----------------------------------- model pieces ----------------------------------------
def transformer_block(xin, p):
    """Pre-norm ViT block; `xin` already contains the 1-D pos embedding.

    Fusion layout: [LN1+QKV] -> per-head attention -> [out-proj + residual]
                   -> [LN2 + fc1(GELU) + fc2 + residual].
    """
    qkv = pallas_ln_linear(xin, p["ln1_g"], p["ln1_b"], p["w_qkv"], p["b_qkv"])   # (T, 3D)
    qkv = qkv.reshape(TOKENS, 3, HEADS, HEAD_DIM).transpose(1, 2, 0, 3)
    q, k, v = qkv[0], qkv[1], qkv[2]
    a = pallas_attention(q, k, v, HEAD_DIM ** -0.5)                               # (H, T, hd)
    a = a.transpose(1, 0, 2).reshape(TOKENS, D)
    x = tiled_matmul(a, p["w_proj"], p["b_proj"], residual=xin)                   # fused residual
    x = pallas_ln_mlp(x, p["ln2_g"], p["ln2_b"],
                      p["w_fc1"], p["b_fc1"], p["w_fc2"], p["b_fc2"])             # fused MLP+res
    return x


def interp_matrix(out_size, in_size):
    """PyTorch bilinear (align_corners=False) 1-D interpolation matrix (out, in)."""
    scale = in_size / out_size
    i = jnp.arange(out_size, dtype=jnp.float32)
    src = jnp.maximum((i + 0.5) * scale - 0.5, 0.0)
    x0 = jnp.floor(src)
    x0i = x0.astype(jnp.int32)
    x1i = jnp.minimum(x0i + 1, in_size - 1)
    l1 = src - x0
    l0 = 1.0 - l1
    A = jnp.zeros((out_size, in_size), FP)
    rows = jnp.arange(out_size)
    A = A.at[rows, x0i].add(l0)
    A = A.at[rows, x1i].add(l1)
    return A


def asts_forward(pc, params):
    """pc: (1, 3, H, W) NCHW. Returns (s_f, nonzero_indices, upsampled_feature_map)."""
    # --- point-cloud unorganize + nonzero mask (glue) ---
    unorganized_pc = jnp.transpose(pc[0], (1, 2, 0)).reshape(-1, pc.shape[1])   # (H*W, 3)
    mask = jnp.all(unorganized_pc != 0, axis=1)
    # TODO(synk): jnp.nonzero is data-dependent-shape (eager only); a scalar-prefetch
    # gather kernel would keep the whole forward jittable — indices kept for the output.
    nonzero_indices = jnp.nonzero(mask)[0]

    # TODO(synk): pretrained PointTransformer teacher + interpolating_points are not
    # provided; replaced with a deterministic Pallas-linear feature stub of matching shape.
    # Computed densely over all pixels + masked (identical to gather/compute/scatter for a
    # pointwise stub) so every kernel keeps static shapes.
    feat_all = tiled_matmul(unorganized_pc.astype(BF), params["w_teacher"],
                            params["b_teacher"], tm=256)                        # (H*W, C_IN)
    xyz_patch_full = (feat_all * mask[:, None].astype(feat_all.dtype)).T        # (C_IN, H*W)

    # --- patch_embed: Conv2d(C_IN, D, k=8, s=8) == patchify (glue) + K-tiled matmul ---
    # w_patch corresponds to torch conv weight (D, C_IN, 8, 8).reshape(D, -1).T
    x_img = xyz_patch_full.reshape(C_IN, GH, PATCH, GW, PATCH)
    patches = jnp.transpose(x_img, (1, 3, 0, 2, 4)).reshape(TOKENS, C_IN * PATCH * PATCH)
    t2s_tokens = tiled_matmul(patches, params["w_patch"], params["b_patch"],
                              tk=512)                                           # (T, D)

    # --- Student_Point_T ---
    # NOTE: the reference computes pos = pos_embed(center) but never uses it; the dead
    # MLP (and `center`) are omitted entirely.
    # TODO(synk): TransformerEncoder source not provided; standard Point-MAE style
    # "x = block(x + pos)" with per-block feature collection is assumed.
    pos1d = params["pos_embed_1d"][0]                                           # (T, D)
    x = t2s_tokens
    feature_list = []
    for blk in params["blocks"]:
        x = transformer_block(x + pos1d, blk)
        feature_list.append(x)

    if len(feature_list) == 12:
        sel = (3, 7, 11)
    elif len(feature_list) == 8:
        sel = (1, 4, 7)
    elif len(feature_list) == 4:
        sel = (1, 2, 3)
    else:
        sel = (len(feature_list) - 1,)
    # only LayerNorm the selected feature maps (9/12 are discarded in the real model)
    feats = [pallas_layernorm(feature_list[i], params["norm_g"], params["norm_b"],
                              out_dtype=FP).T for i in sel]                     # each (D, T)
    # student_to_vit is Identity and the slice+re-concat in the reference is an exact
    # identity permutation -> skipped.
    s_f = jnp.concatenate(feats, axis=0)[None]                                  # (1, 3D, T)

    # --- bilinear upsample (align_corners=False), fused as ONE lane-dense matmul ---
    # B[gh*GW+gw, h*W+w] = Ah[h,gh]*Aw[w,gw]  (kron of the two 1-D interp matrices).
    # TODO(synk): at real 28->224 scale the separable two-matmul form (smaller weights)
    # is preferable; kron keeps this a single pipelined kernel with lane-dense stores.
    Ah = interp_matrix(H_IMG, GH)                                               # (H, GH)
    Aw = interp_matrix(W_IMG, GW)                                               # (W, GW)
    B = (Ah.T[:, None, :, None] * Aw.T[None, :, None, :]).reshape(TOKENS, H_IMG * W_IMG)
    C_out = s_f.shape[1]
    up_flat = tiled_matmul(s_f[0], B, out_dtype=FP, tm=64, tn=256)              # (3D, H*W)
    xyz_patch_up = up_flat.reshape(1, C_out, H_IMG, W_IMG)                      # (1, C, H, W)

    return s_f, nonzero_indices, xyz_patch_up


# ----------------------------------- parameters ------------------------------------------
def init_params(key):
    keys = iter(jax.random.split(key, 64))

    def nrm(shape, scale=0.02, dtype=BF):
        return (scale * jax.random.normal(next(keys), shape)).astype(dtype)

    params = dict(
        # matmul weights/biases stored in bf16 (MXU path); LN params kept f32.
        w_teacher=nrm((3, C_IN), 0.5), b_teacher=nrm((C_IN,)),
        w_patch=nrm((C_IN * PATCH * PATCH, D)), b_patch=nrm((D,)),
        pos_embed_1d=nrm((1, TOKENS, D)),
        norm_g=jnp.ones((D,), FP), norm_b=jnp.zeros((D,), FP),
        blocks=[],
    )
    for _ in range(DEPTH):
        params["blocks"].append(dict(
            ln1_g=jnp.ones((D,), FP), ln1_b=jnp.zeros((D,), FP),
            w_qkv=nrm((D, 3 * D)), b_qkv=nrm((3 * D,)),
            w_proj=nrm((D, D)), b_proj=nrm((D,)),
            ln2_g=jnp.ones((D,), FP), ln2_b=jnp.zeros((D,), FP),
            w_fc1=nrm((D, MLP_DIM)), b_fc1=nrm((MLP_DIM,)),
            w_fc2=nrm((MLP_DIM, D)), b_fc2=nrm((D,)),
        ))
    return params


# -------------------------------------- main ---------------------------------------------
if __name__ == "__main__":
    key = jax.random.PRNGKey(0)
    kp, kx = jax.random.split(key)
    params = init_params(kp)

    # deterministic point-cloud input (NCHW); zero out every 5th pixel so the
    # nonzero-mask path is exercised.
    pc = jax.random.normal(kx, (1, 3, H_IMG, W_IMG), FP)
    zero_mask = (jnp.arange(H_IMG * W_IMG) % 5 != 0).astype(FP).reshape(1, 1, H_IMG, W_IMG)
    pc = pc * zero_mask

    s_f, nz_idx, up = asts_forward(pc, params)
    jax.block_until_ready((s_f, nz_idx, up))

    assert s_f.shape == (1, 3 * D, TOKENS)
    assert up.shape == (1, 3 * D, H_IMG, W_IMG)
    print("KERNEL_OK")
</pallas_src>

<mosaic_0001>
module attributes {stable_mosaic.version = 11 : i64} {
  func.func @_matmul_kernel(%arg0: i32, %arg1: i32, %arg2: i32, %arg3: memref<256x3xbf16, #tpu.memory_space<vmem>>, %arg4: memref<3x48xbf16, #tpu.memory_space<vmem>>, %arg5: memref<1x48xbf16, #tpu.memory_space<vmem>>, %arg6: memref<256x48xbf16, #tpu.memory_space<vmem>>, %arg7: memref<256x48xf32, #tpu.memory_space<vmem>>) attributes {dimension_semantics = [#tpu.dimension_semantics<parallel>, #tpu.dimension_semantics<parallel>, #tpu.dimension_semantics<arbitrary>], iteration_bounds = array<i64: 4, 1, 1>, scalar_prefetch = 0 : i64, scratch_operands = 1 : i64, tpu.core_type = #tpu.core_type<tc>, window_params = [{transform_indices = @transform_0, window_bounds = array<i64: 256, 3>}, {transform_indices = @transform_1, window_bounds = array<i64: 3, 48>}, {transform_indices = @transform_2, window_bounds = array<i64: 1, 48>}, {transform_indices = @transform_3, window_bounds = array<i64: 256, 48>}]} {
    %c0_i32 = arith.constant 0 : i32
    %0 = arith.cmpi eq, %arg2, %c0_i32 : i32
    %1 = arith.extui %0 : i1 to i32
    %c0_i32_0 = arith.constant 0 : i32
    %2 = arith.cmpi ne, %1, %c0_i32_0 : i32
    scf.if %2 {
      %cst_10 = arith.constant 0.000000e+00 : f32
      %12 = vector.broadcast %cst_10 : f32 to vector<256x48xf32>
      %c0_11 = arith.constant 0 : index
      %c0_12 = arith.constant 0 : index
      %13 = vector.load %arg7[%c0_11, %c0_12] : memref<256x48xf32, #tpu.memory_space<vmem>>, vector<256x48xf32>
      tpu.vector_store %arg7[%c0_11, %c0_12], %12 {strides = array<i32>} : memref<256x48xf32, #tpu.memory_space<vmem>>, vector<256x48xf32>,
    } else {
    }
    %c0 = arith.constant 0 : index
    %c0_1 = arith.constant 0 : index
    %3 = vector.load %arg7[%c0, %c0_1] : memref<256x48xf32, #tpu.memory_space<vmem>>, vector<256x48xf32>
    %c0_2 = arith.constant 0 : index
    %c0_3 = arith.constant 0 : index
    %4 = vector.load %arg3[%c0_2, %c0_3] : memref<256x3xbf16, #tpu.memory_space<vmem>>, vector<256x3xbf16>
    %c0_4 = arith.constant 0 : index
    %c0_5 = arith.constant 0 : index
    %5 = vector.load %arg4[%c0_4, %c0_5] : memref<3x48xbf16, #tpu.memory_space<vmem>>, vector<3x48xbf16>
    %cst = arith.constant dense<0.000000e+00> : vector<256x48xf32>
    %6 = tpu.matmul %4, %5, %cst {dimension_numbers = #tpu.dot_dimension_numbers<[1], [0], [0], [1], [0, 0, 1, 1], [], []>} : vector<256x3xbf16>, vector<3x48xbf16>, vector<256x48xf32> -> vector<256x48xf32>
    %7 = arith.addf %3, %6 : vector<256x48xf32>
    %c0_6 = arith.constant 0 : index
    %c0_7 = arith.constant 0 : index
    %8 = vector.load %arg7[%c0_6, %c0_7] : memref<256x48xf32, #tpu.memory_space<vmem>>, vector<256x48xf32>
    tpu.vector_store %arg7[%c0_6, %c0_7], %7 {strides = array<i32>} : memref<256x48xf32, #tpu.memory_space<vmem>>, vector<256x48xf32>,
    %c0_i32_8 = arith.constant 0 : i32
    %9 = arith.cmpi eq, %arg2, %c0_i32_8 : i32
    %10 = arith.extui %9 : i1 to i32
    %c0_i32_9 = arith.constant 0 : i32
    %11 = arith.cmpi ne, %10, %c0_i32_9 : i32
    scf.if %11 {
      %c0_10 = arith.constant 0 : index
      %c0_11 = arith.constant 0 : index
      %12 = vector.load %arg7[%c0_10, %c0_11] : memref<256x48xf32, #tpu.memory_space<vmem>>, vector<256x48xf32>
      %c0_12 = arith.constant 0 : index
      %c0_13 = arith.constant 0 : index
      %13 = vector.load %arg5[%c0_12, %c0_13] : memref<1x48xbf16, #tpu.memory_space<vmem>>, vector<1x48xbf16>
      %14 = arith.extf %13 : vector<1x48xbf16> to vector<1x48xf32>
      %15 = vector.broadcast %14 : vector<1x48xf32> to vector<256x48xf32>
      %16 = arith.addf %12, %15 : vector<256x48xf32>
      %17 = arith.truncf %16 : vector<256x48xf32> to vector<256x48xbf16>
      %c0_14 = arith.constant 0 : index
      %c0_15 = arith.constant 0 : index
      %18 = vector.load %arg6[%c0_14, %c0_15] : memref<256x48xbf16, #tpu.memory_space<vmem>>, vector<256x48xbf16>
      tpu.vector_store %arg6[%c0_14, %c0_15], %17 {strides = array<i32>} : memref<256x48xbf16, #tpu.memory_space<vmem>>, vector<256x48xbf16>,
    } else {
    }
    return
  }
  func.func @transform_0(%arg0: i32, %arg1: i32, %arg2: i32) -> (i32, i32) {
    %c0_i32 = arith.constant 0 : i32
    return %arg0, %arg2 : i32, i32
  }
  func.func @transform_1(%arg0: i32, %arg1: i32, %arg2: i32) -> (i32, i32) {
    %c0_i32 = arith.constant 0 : i32
    return %arg2, %arg1 : i32, i32
  }
  func.func @transform_2(%arg0: i32, %arg1: i32, %arg2: i32) -> (i32, i32) {
    %c0_i32 = arith.constant 0 : i32
    %c0_i32_0 = arith.constant 0 : i32
    return %c0_i32, %arg1 : i32, i32
  }
  func.func @transform_3(%arg0: i32, %arg1: i32, %arg2: i32) -> (i32, i32) {
    %c0_i32 = arith.constant 0 : i32
    return %arg0, %arg1 : i32, i32
  }
}

</mosaic_0001>

<llo_original>
// kernel: tpu_custom_call.1
$region0: #{tpu_custom_call.1}
  #allocation0 [shape = 'u32[]', space=smem, size = 0x4, offset = 0x4, fixed_abs, tag = 'smem constant byte address 0x4 - core index']
  #allocation1 [shape = 'u32[144,128]{1,0:T(1,128)}', space=vmem, size = 0x12000, scoped, tag = 'internal scratch']
  #allocation2 [shape = 'f32[256,48]{1,0:T(8,128)}', space=vmem, size = 0x20000, scoped, tag = 'scratch operand']
  %s0 = inlined_call_operand.vmem [shape: bf16[1024,3], index: 0, kind: input, shape index: {}]
  %s1 = inlined_call_operand.vmem [shape: bf16[3,48], index: 1, kind: input, shape index: {}]
  %s2 = inlined_call_operand.vmem [shape: bf16[1,48], index: 2, kind: input, shape index: {}]
  %s3 = inlined_call_operand.vmem [shape: bf16[1024,48], index: 3, kind: output, shape index: {}]
  %s4 = sld [smem:[#allocation0]]
  $region53: #{tpu_custom_call.1} parent=0
    _
  %s6 = ssub.s32 1, %s4
  %s7 = scalar_select 0, %s6, %s4
  loop: start=0, step=1, limit=6
  $region2: #{tpu_custom_call.1} parent=0 // loop_pre_header
    _
  $region3: #{tpu_custom_call.1} parent=0 // loop_header
    %s9 = sphi 0, %s13
    %p10 = scmp.ge.s32.totalorder %s9, 6
    %s16 = sphi 0, %s35
    %s17 = sphi 0, %s31
    %s18 = sphi 0, %s27
    %s19 = sphi 0, %s16
    %s20 = sphi 0, %s17
    %s21 = sphi 0, %s18
    %s22 = sphi 0, %s19
    %s23 = sphi 0, %s20
    %s24 = sphi 0, %s21
    %s40 = sphi 0, %s42
    %s43 = sphi 0, %s40
    %s44 = sphi 0, %s43
    %s60 = sphi 0, %s44
    %s68 = sphi 0, %s70
    %s71 = sphi 0, %s68
    %s72 = sphi 0, %s71
    %s88 = sphi 0, %s72
    %s94 = sphi 0, %s96
    %s97 = sphi 0, %s94
    %s98 = sphi 0, %s97
    %s114 = sphi 0, %s98
    %s122 = sphi 0, %s124
    %s125 = sphi 0, %s122
    %s126 = sphi 0, %s125
    %s142 = sphi 0, %s126
  $region4: #{tpu_custom_call.1} parent=0 // loop_header_branch
    %12 = sbr.rel (%p10) target = $region8
  $region5: #{tpu_custom_call.1} parent=0 // loop_body
    %s14 = ssub.s32 %s9, 1
    %s15 = ssub.s32 %s9, 2
    %s25 = sadd.s32 1, %s18
    %p26 = scmp.ge.s32.totalorder %s25, 1
    %s27 = scalar_select %p26, 0, %s25
    %s28 = sadd.s32 1, %s17
    %s29 = scalar_select %p26, %s28, %s17
    %p30 = scmp.ge.s32.totalorder %s29, 1
    %s31 = scalar_select %p30, 0, %s29
    %s32 = sadd.s32 1, %s16
    %s33 = scalar_select %p30, %s32, %s16
    %p34 = scmp.ge.s32.totalorder %s33, 4
    %s35 = scalar_select %p34, 0, %s33
    %s36 = ssub.s32 %s16, %s35
    %s37 = ssub.s32 %s18, %s27
    %s38 = sor.u32 %s36, %s37
    %p39 = scmp.eq.s32.totalorder %s38, 0
    %s41 = sadd.s32 %s40, 1
    %s42 = scalar_select %p39, %s40, %s41
    %p45 = pneg %p39
    %p46 = scmp.eq.s32.totalorder %s9, 3
    %p47 = por %p45, %p46
    %p48 = scmp.ne.s32.totalorder %s40, %s43
    %p49 = scmp.eq.s32.totalorder %s9, 0
    %p50 = por %p48, %p49
    %p51 = scmp.ne.s32.totalorder %s40, %s43
    %p52 = scmp.eq.s32.totalorder %s14, 3
    %p53 = por %p51, %p52
    %p54 = scmp.ne.s32.totalorder %s43, %s44
    %p55 = scmp.eq.s32.totalorder %s14, 0
    %p56 = por %p54, %p55
    %p57 = scmp.ne.s32.totalorder %s43, %s44
    %p58 = scmp.eq.s32.totalorder %s15, 3
    %p59 = por %p57, %p58
    %p61 = scmp.ne.s32.totalorder %s44, %s60
    %p62 = scmp.eq.s32.totalorder %s15, 0
    %p63 = por %p61, %p62
    %s64 = ssub.s32 %s18, %s27
    %s65 = ssub.s32 %s17, %s31
    %s66 = sor.u32 %s64, %s65
    %p67 = scmp.eq.s32.totalorder %s66, 0
    %s69 = sadd.s32 %s68, 1
    %s70 = scalar_select %p67, %s68, %s69
    %p73 = pneg %p67
    %p74 = scmp.eq.s32.totalorder %s9, 3
    %p75 = por %p73, %p74
    %p76 = scmp.ne.s32.totalorder %s68, %s71
    %p77 = scmp.eq.s32.totalorder %s9, 0
    %p78 = por %p76, %p77
    %p79 = scmp.ne.s32.totalorder %s68, %s71
    %p80 = scmp.eq.s32.totalorder %s14, 3
    %p81 = por %p79, %p80
    %p82 = scmp.ne.s32.totalorder %s71, %s72
    %p83 = scmp.eq.s32.totalorder %s14, 0
    %p84 = por %p82, %p83
    %p85 = scmp.ne.s32.totalorder %s71, %s72
    %p86 = scmp.eq.s32.totalorder %s15, 3
    %p87 = por %p85, %p86
    %p89 = scmp.ne.s32.totalorder %s72, %s88
    %p90 = scmp.eq.s32.totalorder %s15, 0
    %p91 = por %p89, %p90
    %s92 = ssub.s32 %s17, %s31
    %p93 = scmp.eq.s32.totalorder %s92, 0
    %s95 = sadd.s32 %s94, 1
    %s96 = scalar_select %p93, %s94, %s95
    %p99 = pneg %p93
    %p100 = scmp.eq.s32.totalorder %s9, 3
    %p101 = por %p99, %p100
    %p102 = scmp.ne.s32.totalorder %s94, %s97
    %p103 = scmp.eq.s32.totalorder %s9, 0
    %p104 = por %p102, %p103
    %p105 = scmp.ne.s32.totalorder %s94, %s97
    %p106 = scmp.eq.s32.totalorder %s14, 3
    %p107 = por %p105, %p106
    %p108 = scmp.ne.s32.totalorder %s97, %s98
    %p109 = scmp.eq.s32.totalorder %s14, 0
    %p110 = por %p108, %p109
    %p111 = scmp.ne.s32.totalorder %s97, %s98
    %p112 = scmp.eq.s32.totalorder %s15, 3
    %p113 = por %p111, %p112
    %p115 = scmp.ne.s32.totalorder %s98, %s114
    %p116 = scmp.eq.s32.totalorder %s15, 0
    %p117 = por %p115, %p116
    %s118 = ssub.s32 %s16, %s35
    %s119 = ssub.s32 %s17, %s31
    %s120 = sor.u32 %s118, %s119
    %p121 = scmp.eq.s32.totalorder %s120, 0
    %s123 = sadd.s32 %s122, 1
    %s124 = scalar_select %p121, %s122, %s123
    %p127 = pneg %p121
    %p128 = scmp.eq.s32.totalorder %s9, 3
    %p129 = por %p127, %p128
    %p130 = scmp.ne.s32.totalorder %s122, %s125
    %p131 = scmp.eq.s32.totalorder %s9, 0
    %p132 = por %p130, %p131
    %p133 = scmp.ne.s32.totalorder %s122, %s125
    %p134 = scmp.eq.s32.totalorder %s14, 3
    %p135 = por %p133, %p134
    %p136 = scmp.ne.s32.totalorder %s125, %s126
    %p137 = scmp.eq.s32.totalorder %s14, 0
    %p138 = por %p136, %p137
    %p139 = scmp.ne.s32.totalorder %s125, %s126
    %p140 = scmp.eq.s32.totalorder %s15, 3
    %p141 = por %p139, %p140
    %p143 = scmp.ne.s32.totalorder %s126, %s142
    %p144 = scmp.eq.s32.totalorder %s15, 0
    %p145 = por %p143, %p144
    %p146 = scmp.le.s32.totalorder 1, %s9
    %p147 = scmp.lt.s32.totalorder %s9, 5
    %p148 = pnand %p146, %p147
    %p149 = pneg %p148
    // Predicated region
    $region9: #{tpu_custom_call.1} parent=5 // pred_check
      _
    $region10: #{tpu_custom_call.1} parent=5 // pred_check_branch
      %151 = sbr.rel (%p148) target = $region12
    $region11: #{tpu_custom_call.1} parent=5 // pred_region
      %s152 = ssub.s32 %s9, 1
      // Predicated region
      $region13: #{tpu_custom_call.1} parent=11 // pred_check
        %p153 = pneg %p84
      $region14: #{tpu_custom_call.1} parent=11 // pred_check_branch
        %155 = sbr.rel (%p153) target = $region16
      $region15: #{tpu_custom_call.1} parent=11 // pred_region
        %p156 = scmp.lt.s32.totalorder %s21, 0
        %s157 = scalar_select %p156, %s21, 0
        %p158 = scmp.lt.s32.totalorder %s20, 0
        %s159 = scalar_select %p158, %s20, 0
        %s160 = sadd.s32 %s159, %s157
        %s161 = smul.addr %s160, 2
        %s162 = scalar_lea.vmem %s1, %s161
      $region16: #{tpu_custom_call.1} parent=11 // pred_fallthru
        _
      // Predicated region
      $region17: #{tpu_custom_call.1} parent=11 // pred_check
        %p163 = pneg %p110
      $region18: #{tpu_custom_call.1} parent=11 // pred_check_branch
        %165 = sbr.rel (%p163) target = $region20
      $region19: #{tpu_custom_call.1} parent=11 // pred_region
        %p166 = scmp.lt.s32.totalorder %s20, 0
        %s167 = scalar_select %p166, %s20, 0
        %s168 = scalar_lea.vmem %s2, %s167
      $region20: #{tpu_custom_call.1} parent=11 // pred_fallthru
        _
    $region12: #{tpu_custom_call.1} parent=5 // pred_fallthru
      _
    %p169 = scmp.lt.s32.totalorder %s9, 4
    // Predicated region
    $region21: #{tpu_custom_call.1} parent=5 // pred_check
      %p170 = pneg %p169
    $region22: #{tpu_custom_call.1} parent=5 // pred_check_branch
      %172 = sbr.rel (%p170) target = $region24
    $region23: #{tpu_custom_call.1} parent=5 // pred_region
      // Predicated region
      $region25: #{tpu_custom_call.1} parent=23 // pred_check
        %p173 = pneg %p50
      $region26: #{tpu_custom_call.1} parent=23 // pred_check_branch
        %175 = sbr.rel (%p173) target = $region28
      $region27: #{tpu_custom_call.1} parent=23 // pred_region
        %s176 = smul.u32 32, %s16
        %p177 = scmp.lt.s32.totalorder %s176, 127
        %s178 = scalar_select %p177, %s176, 127
        %p179 = scmp.lt.s32.totalorder %s18, 0
        %s180 = scalar_select %p179, %s18, 0
        %s181 = sadd.s32 %s180, %s178
        %s182 = smul.addr %s181, 4
        %s183 = scalar_lea.vmem %s0, %s182
        %s184 = smul.u32 32, %s16
      $region28: #{tpu_custom_call.1} parent=23 // pred_fallthru
        _
    $region24: #{tpu_custom_call.1} parent=5 // pred_fallthru
      _
    %p185 = scmp.le.s32.totalorder 1, %s9
    %p186 = scmp.lt.s32.totalorder %s9, 5
    %p187 = pnand %p185, %p186
    %p188 = pneg %p187
    // Predicated region
    $region29: #{tpu_custom_call.1} parent=5 // pred_check
      _
    $region30: #{tpu_custom_call.1} parent=5 // pred_check_branch
      %190 = sbr.rel (%p187) target = $region32
    $region31: #{tpu_custom_call.1} parent=5 // pred_region
      %s191 = ssub.s32 %s9, 1
      %s192 = smul.u32 32, %s19
      %p193 = scmp.lt.s32.totalorder %s192, 127
      %s194 = scalar_select %p193, %s192, 127
      %p195 = scmp.lt.s32.totalorder %s21, 0
      %s196 = scalar_select %p195, %s21, 0
      %s197 = sadd.s32 %s196, %s194
      %s198 = smul.addr %s197, 4
      %s199 = scalar_lea.vmem %s0, %s198
      %p200 = pneg %p56
      %p201 = pneg %p53
      %p202 = scmp.lt.s32.totalorder %s21, 0
      %s203 = scalar_select %p202, %s21, 0
      %p204 = scmp.lt.s32.totalorder %s20, 0
      %s205 = scalar_select %p204, %s20, 0
      %s206 = sadd.s32 %s205, %s203
      %s207 = smul.addr %s206, 2
      %s208 = scalar_lea.vmem %s1, %s207
      %p209 = pneg %p84
      %p210 = pneg %p81
      %p211 = scmp.lt.s32.totalorder %s20, 0
      %s212 = scalar_select %p211, %s20, 0
      %s213 = scalar_lea.vmem %s2, %s212
      %p214 = pneg %p110
      %p215 = pneg %p107
      %p216 = pneg %p138
      %p217 = pneg %p135
      %s218 = smul.u32 32, %s19
      %p219 = scmp.lt.s32.totalorder %s218, 127
      %s220 = scalar_select %p219, %s218, 127
      %p221 = scmp.lt.s32.totalorder %s20, 0
      %s222 = scalar_select %p221, %s20, 0
      %s223 = sadd.s32 %s222, %s220
      %s224 = smul.addr %s223, 4
      %s225 = scalar_lea.vmem %s3, %s224
      %s226 = smul.u32 32, %s19
      %p227 = scmp.lt.s32.totalorder %s226, 127
      %s228 = scalar_select %p227, %s226, 127
      %p229 = scmp.lt.s32.totalorder %s21, 0
      %s230 = scalar_select %p229, %s21, 0
      %s231 = sadd.s32 %s230, %s228
      %s232 = smul.addr %s231, 4
      %s233 = scalar_lea.vmem %s0, %s232
      %s234 = smul.u32 32, %s19
      %p235 = scmp.lt.s32.totalorder %s21, 0
      %s236 = scalar_select %p235, %s21, 0
      %p237 = scmp.lt.s32.totalorder %s20, 0
      %s238 = scalar_select %p237, %s20, 0
      %s239 = sadd.s32 %s238, %s236
      %s240 = smul.addr %s239, 2
      %s241 = scalar_lea.vmem %s1, %s240
      %p242 = scmp.lt.s32.totalorder %s20, 0
      %s243 = scalar_select %p242, %s20, 0
      %s244 = scalar_lea.vmem %s2, %s243
      %s245 = smul.u32 32, %s19
      %p246 = scmp.lt.s32.totalorder %s245, 127
      %s247 = scalar_select %p246, %s245, 127
      %p248 = scmp.lt.s32.totalorder %s20, 0
      %s249 = scalar_select %p248, %s20, 0
      %s250 = sadd.s32 %s249, %s247
      %s251 = smul.addr %s250, 4
      %s252 = scalar_lea.vmem %s3, %s251
      %s253 = smul.u32 32, %s19
      %p255 = scmp.eq.s32.totalorder %s21, 0
      // Predicated region
      $region33: #{tpu_custom_call.1} parent=31 // pred_check
        %p256 = pneg %p255
      $region34: #{tpu_custom_call.1} parent=31 // pred_check_branch
        %258 = sbr.rel (%p256) target = $region36
      $region35: #{tpu_custom_call.1} parent=31 // pred_region
        %vm259 = vcmask 392192
        %260 = vst.msk [vmem:[#allocation2] sm:$0xff] %vm259, 0.0
        %261 = vst.msk [vmem:[#allocation2 + $0x8] sm:$0xff] %vm259, 0.0
        %262 = vst.msk [vmem:[#allocation2 + $0x10] sm:$0xff] %vm259, 0.0
        %263 = vst.msk [vmem:[#allocation2 + $0x18] sm:$0xff] %vm259, 0.0
        %264 = vst.msk [vmem:[#allocation2 + $0x20] sm:$0xff] %vm259, 0.0
        %265 = vst.msk [vmem:[#allocation2 + $0x28] sm:$0xff] %vm259, 0.0
        %266 = vst.msk [vmem:[#allocation2 + $0x30] sm:$0xff] %vm259, 0.0
        %267 = vst.msk [vmem:[#allocation2 + $0x38] sm:$0xff] %vm259, 0.0
        %268 = vst.msk [vmem:[#allocation2 + $0x40] sm:$0xff] %vm259, 0.0
        %269 = vst.msk [vmem:[#allocation2 + $0x48] sm:$0xff] %vm259, 0.0
        %270 = vst.msk [vmem:[#allocation2 + $0x50] sm:$0xff] %vm259, 0.0
        %271 = vst.msk [vmem:[#allocation2 + $0x58] sm:$0xff] %vm259, 0.0
        %272 = vst.msk [vmem:[#allocation2 + $0x60] sm:$0xff] %vm259, 0.0
        %273 = vst.msk [vmem:[#allocation2 + $0x68] sm:$0xff] %vm259, 0.0
        %274 = vst.msk [vmem:[#allocation2 + $0x70] sm:$0xff] %vm259, 0.0
        %275 = vst.msk [vmem:[#allocation2 + $0x78] sm:$0xff] %vm259, 0.0
        %276 = vst.msk [vmem:[#allocation2 + $0x80] sm:$0xff] %vm259, 0.0
        %277 = vst.msk [vmem:[#allocation2 + $0x88] sm:$0xff] %vm259, 0.0
        %278 = vst.msk [vmem:[#allocation2 + $0x90] sm:$0xff] %vm259, 0.0
        %279 = vst.msk [vmem:[#allocation2 + $0x98] sm:$0xff] %vm259, 0.0
        %280 = vst.msk [vmem:[#allocation2 + $0xa0] sm:$0xff] %vm259, 0.0
        %281 = vst.msk [vmem:[#allocation2 + $0xa8] sm:$0xff] %vm259, 0.0
        %282 = vst.msk [vmem:[#allocation2 + $0xb0] sm:$0xff] %vm259, 0.0
        %283 = vst.msk [vmem:[#allocation2 + $0xb8] sm:$0xff] %vm259, 0.0
        %284 = vst.msk [vmem:[#allocation2 + $0xc0] sm:$0xff] %vm259, 0.0
        %285 = vst.msk [vmem:[#allocation2 + $0xc8] sm:$0xff] %vm259, 0.0
        %286 = vst.msk [vmem:[#allocation2 + $0xd0] sm:$0xff] %vm259, 0.0
        %287 = vst.msk [vmem:[#allocation2 + $0xd8] sm:$0xff] %vm259, 0.0
        %288 = vst.msk [vmem:[#allocation2 + $0xe0] sm:$0xff] %vm259, 0.0
        %289 = vst.msk [vmem:[#allocation2 + $0xe8] sm:$0xff] %vm259, 0.0
        %290 = vst.msk [vmem:[#allocation2 + $0xf0] sm:$0xff] %vm259, 0.0
        %291 = vst.msk [vmem:[#allocation2 + $0xf8] sm:$0xff] %vm259, 0.0
      $region36: #{tpu_custom_call.1} parent=31 // pred_fallthru
        _
      %v292 = vld [vmem:[#allocation2] sm:$0xff]
      %v293 = vld [vmem:[#allocation2 + $0x8] sm:$0xff]
      %v294 = vld [vmem:[#allocation2 + $0x10] sm:$0xff]
      %v295 = vld [vmem:[#allocation2 + $0x18] sm:$0xff]
      %v296 = vld [vmem:[#allocation2 + $0x20] sm:$0xff]
      %v297 = vld [vmem:[#allocation2 + $0x28] sm:$0xff]
      %v298 = vld [vmem:[#allocation2 + $0x30] sm:$0xff]
      %v299 = vld [vmem:[#allocation2 + $0x38] sm:$0xff]
      %v300 = vld [vmem:[#allocation2 + $0x40] sm:$0xff]
      %v301 = vld [vmem:[#allocation2 + $0x48] sm:$0xff]
      %v302 = vld [vmem:[#allocation2 + $0x50] sm:$0xff]
      %v303 = vld [vmem:[#allocation2 + $0x58] sm:$0xff]
      %v304 = vld [vmem:[#allocation2 + $0x60] sm:$0xff]
      %v305 = vld [vmem:[#allocation2 + $0x68] sm:$0xff]
      %v306 = vld [vmem:[#allocation2 + $0x70] sm:$0xff]
      %v307 = vld [vmem:[#allocation2 + $0x78] sm:$0xff]
      %v308 = vld [vmem:[#allocation2 + $0x80] sm:$0xff]
      %v309 = vld [vmem:[#allocation2 + $0x88] sm:$0xff]
      %v310 = vld [vmem:[#allocation2 + $0x90] sm:$0xff]
      %v311 = vld [vmem:[#allocation2 + $0x98] sm:$0xff]
      %v312 = vld [vmem:[#allocation2 + $0xa0] sm:$0xff]
      %v313 = vld [vmem:[#allocation2 + $0xa8] sm:$0xff]
      %v314 = vld [vmem:[#allocation2 + $0xb0] sm:$0xff]
      %v315 = vld [vmem:[#allocation2 + $0xb8] sm:$0xff]
      %v316 = vld [vmem:[#allocation2 + $0xc0] sm:$0xff]
      %v317 = vld [vmem:[#allocation2 + $0xc8] sm:$0xff]
      %v318 = vld [vmem:[#allocation2 + $0xd0] sm:$0xff]
      %v319 = vld [vmem:[#allocation2 + $0xd8] sm:$0xff]
      %v320 = vld [vmem:[#allocation2 + $0xe0] sm:$0xff]
      %v321 = vld [vmem:[#allocation2 + $0xe8] sm:$0xff]
      %v322 = vld [vmem:[#allocation2 + $0xf0] sm:$0xff]
      %v323 = vld [vmem:[#allocation2 + $0xf8] sm:$0xff]
      %v324 = vld [vmem:[%s233] sm:$0xf]
      %v325 = vld [vmem:[%s233 + $0x4] sm:$0xf]
      %v326 = vld [vmem:[%s233 + $0x8] sm:$0xf]
      %v327 = vld [vmem:[%s233 + $0xc] sm:$0xf]
      %v328 = vld [vmem:[%s233 + $0x10] sm:$0xf]
      %v329 = vld [vmem:[%s233 + $0x14] sm:$0xf]
      %v330 = vld [vmem:[%s233 + $0x18] sm:$0xf]
      %v331 = vld [vmem:[%s233 + $0x1c] sm:$0xf]
      %v332 = vld [vmem:[%s233 + $0x20] sm:$0xf]
      %v333 = vld [vmem:[%s233 + $0x24] sm:$0xf]
      %v334 = vld [vmem:[%s233 + $0x28] sm:$0xf]
      %v335 = vld [vmem:[%s233 + $0x2c] sm:$0xf]
      %v336 = vld [vmem:[%s233 + $0x30] sm:$0xf]
      %v337 = vld [vmem:[%s233 + $0x34] sm:$0xf]
      %v338 = vld [vmem:[%s233 + $0x38] sm:$0xf]
      %v339 = vld [vmem:[%s233 + $0x3c] sm:$0xf]
      %v340 = vld [vmem:[%s233 + $0x40] sm:$0xf]
      %v341 = vld [vmem:[%s233 + $0x44] sm:$0xf]
      %v342 = vld [vmem:[%s233 + $0x48] sm:$0xf]
      %v343 = vld [vmem:[%s233 + $0x4c] sm:$0xf]
      %v344 = vld [vmem:[%s233 + $0x50] sm:$0xf]
      %v345 = vld [vmem:[%s233 + $0x54] sm:$0xf]
      %v346 = vld [vmem:[%s233 + $0x58] sm:$0xf]
      %v347 = vld [vmem:[%s233 + $0x5c] sm:$0xf]
      %v348 = vld [vmem:[%s233 + $0x60] sm:$0xf]
      %v349 = vld [vmem:[%s233 + $0x64] sm:$0xf]
      %v350 = vld [vmem:[%s233 + $0x68] sm:$0xf]
      %v351 = vld [vmem:[%s233 + $0x6c] sm:$0xf]
      %v352 = vld [vmem:[%s233 + $0x70] sm:$0xf]
      %v353 = vld [vmem:[%s233 + $0x74] sm:$0xf]
      %v354 = vld [vmem:[%s233 + $0x78] sm:$0xf]
      %v355 = vld [vmem:[%s233 + $0x7c] sm:$0xf]
      %v356 = vld [vmem:[%s241] sm:$0x3]
      %v389 = vunpack.c.l.b16 %v324
      %v390 = vunpack.c.l.b16 %v325
      %v391 = vunpack.c.l.b16 %v326
      %v392 = vunpack.c.l.b16 %v327
      %v393 = vunpack.c.l.b16 %v328
      %v394 = vunpack.c.l.b16 %v329
      %v395 = vunpack.c.l.b16 %v330
      %v396 = vunpack.c.l.b16 %v331
      %v397 = vunpack.c.l.b16 %v332
      %v398 = vunpack.c.l.b16 %v333
      %v399 = vunpack.c.l.b16 %v334
      %v400 = vunpack.c.l.b16 %v335
      %v401 = vunpack.c.l.b16 %v336
      %v402 = vunpack.c.l.b16 %v337
      %v403 = vunpack.c.l.b16 %v338
      %v404 = vunpack.c.l.b16 %v339
      %v405 = vunpack.c.l.b16 %v340
      %v406 = vunpack.c.l.b16 %v341
      %v407 = vunpack.c.l.b16 %v342
      %v408 = vunpack.c.l.b16 %v343
      %v409 = vunpack.c.l.b16 %v344
      %v410 = vunpack.c.l.b16 %v345
      %v411 = vunpack.c.l.b16 %v346
      %v412 = vunpack.c.l.b16 %v347
      %v413 = vunpack.c.l.b16 %v348
      %v414 = vunpack.c.l.b16 %v349
      %v415 = vunpack.c.l.b16 %v350
      %v416 = vunpack.c.l.b16 %v351
      %v417 = vunpack.c.l.b16 %v352
      %v418 = vunpack.c.l.b16 %v353
      %v419 = vunpack.c.l.b16 %v354
      %v420 = vunpack.c.l.b16 %v355
      %v421 = vpack.c.b16 %v390, %v389
      %v422 = vpack.c.b16 %v392, %v391
      %v423 = vpack.c.b16 %v394, %v393
      %v424 = vpack.c.b16 %v396, %v395
      %v425 = vpack.c.b16 %v398, %v397
      %v426 = vpack.c.b16 %v400, %v399
      %v427 = vpack.c.b16 %v402, %v401
      %v428 = vpack.c.b16 %v404, %v403
      %v429 = vpack.c.b16 %v406, %v405
      %v430 = vpack.c.b16 %v408, %v407
      %v431 = vpack.c.b16 %v410, %v409
      %v432 = vpack.c.b16 %v412, %v411
      %v433 = vpack.c.b16 %v414, %v413
      %v434 = vpack.c.b16 %v416, %v415
      %v435 = vpack.c.b16 %v418, %v417
      %v436 = vpack.c.b16 %v420, %v419
      %vm437 = vcmask 23552
      %v439 = vsel %vm437, %v421, 0
      %v442 = vsel %vm437, %v422, 0
      %v445 = vsel %vm437, %v423, 0
      %v448 = vsel %vm437, %v424, 0
      %v451 = vsel %vm437, %v425, 0
      %v454 = vsel %vm437, %v426, 0
      %v457 = vsel %vm437, %v427, 0
      %v460 = vsel %vm437, %v428, 0
      %v463 = vsel %vm437, %v429, 0
      %v466 = vsel %vm437, %v430, 0
      %v469 = vsel %vm437, %v431, 0
      %v472 = vsel %vm437, %v432, 0
      %v475 = vsel %vm437, %v433, 0
      %v478 = vsel %vm437, %v434, 0
      %v481 = vsel %vm437, %v435, 0
      %v484 = vsel %vm437, %v436, 0
      %vm486 = vcmask 1040384
      %vm487 = vcmask 1041408
      %v488 = vsel %vm486, 4294967295, 65535
      %v489 = vsel %vm487, %v488, 0
      %v491 = vand.u32 %v356, %v489
      %493 = vmatprep.subr.bf16.mxu0 0
      %494 = vmatpush1.bf16.msra.mxu0 %v491
      %495 = vmatprep.subr.bf16.mxu0 0
      %496 = vmatpush1.bf16.msra.mxu0 0
      %497 = vmatprep.subr.bf16.mxu0 0
      %498 = vmatpush1.bf16.msra.mxu0 0
      %499 = vmatprep.subr.bf16.mxu0 0
      %500 = vmatpush1.bf16.msra.mxu0 0
      %501 = vmatprep.subr.bf16.mxu0 0
      %502 = vmatpush1.bf16.msra.mxu0 0
      %503 = vmatprep.subr.bf16.mxu0 0
      %504 = vmatpush1.bf16.msra.mxu0 0
      %505 = vmatprep.subr.bf16.mxu0 0
      %506 = vmatpush1.bf16.msra.mxu0 0
      %507 = vmatprep.subr.bf16.mxu0 0
      %508 = vmatpush1.bf16.msra.mxu0 0
      %509 = vmatprep.subr.bf16.mxu0 0
      %510 = vmatpush1.bf16.msra.mxu0 0
      %511 = vmatprep.subr.bf16.mxu0 0
      %512 = vmatpush1.bf16.msra.mxu0 0
      %513 = vmatprep.subr.bf16.mxu0 0
      %514 = vmatpush1.bf16.msra.mxu0 0
      %515 = vmatprep.subr.bf16.mxu0 0
      %516 = vmatpush1.bf16.msra.mxu0 0
      %517 = vmatprep.subr.bf16.mxu0 0
      %518 = vmatpush1.bf16.msra.mxu0 0
      %519 = vmatprep.subr.bf16.mxu0 0
      %520 = vmatpush1.bf16.msra.mxu0 0
      %521 = vmatprep.subr.bf16.mxu0 0
      %522 = vmatpush1.bf16.msra.mxu0 0
      %523 = vmatprep.subr.bf16.mxu0 0
      %524 = vmatpush1.bf16.msra.mxu0 0
      %525 = vmatprep.mubr.bf16.mxu0 0
      %526 = vmatmul.mubr.bf16.gmra.mrb[0].mxu0 %v439
      %v527 = vpop.f32.mrb[0].mxu0
      %v528 = vadd.f32 0.0, %v527
      %v529 = vpop.f32.mrb[0].mxu0
      %v530 = vpop.f32.mrb[0].mxu0
      %v531 = vadd.f32 0.0, %v530
      %v532 = vpop.f32.mrb[0].mxu0
      %533 = vmatprep.mubr.bf16.mxu0 0
      %534 = vmatmul.mubr.bf16.gmra.mrb[0].mxu0 %v442
      %v535 = vpop.f32.mrb[0].mxu0
      %v536 = vadd.f32 0.0, %v535
      %v537 = vpop.f32.mrb[0].mxu0
      %v538 = vpop.f32.mrb[0].mxu0
      %v539 = vadd.f32 0.0, %v538
      %v540 = vpop.f32.mrb[0].mxu0
      %541 = vmatprep.mubr.bf16.mxu0 0
      %542 = vmatmul.mubr.bf16.gmra.mrb[0].mxu0 %v445
      %v543 = vpop.f32.mrb[0].mxu0
      %v544 = vadd.f32 0.0, %v543
      %v545 = vpop.f32.mrb[0].mxu0
      %v546 = vpop.f32.mrb[0].mxu0
      %v547 = vadd.f32 0.0, %v546
      %v548 = vpop.f32.mrb[0].mxu0
      %549 = vmatprep.mubr.bf16.mxu0 0
      %550 = vmatmul.mubr.bf16.gmra.mrb[0].mxu0 %v448
      %v551 = vpop.f32.mrb[0].mxu0
      %v552 = vadd.f32 0.0, %v551
      %v553 = vpop.f32.mrb[0].mxu0
      %v554 = vpop.f32.mrb[0].mxu0
      %v555 = vadd.f32 0.0, %v554
      %v556 = vpop.f32.mrb[0].mxu0
      %557 = vmatprep.mubr.bf16.mxu0 0
      %558 = vmatmul.mubr.bf16.gmra.mrb[0].mxu0 %v451
      %v559 = vpop.f32.mrb[0].mxu0
      %v560 = vadd.f32 0.0, %v559
      %v561 = vpop.f32.mrb[0].mxu0
      %v562 = vpop.f32.mrb[0].mxu0
      %v563 = vadd.f32 0.0, %v562
      %v564 = vpop.f32.mrb[0].mxu0
      %565 = vmatprep.mubr.bf16.mxu0 0
      %566 = vmatmul.mubr.bf16.gmra.mrb[0].mxu0 %v454
      %v567 = vpop.f32.mrb[0].mxu0
      %v568 = vadd.f32 0.0, %v567
      %v569 = vpop.f32.mrb[0].mxu0
      %v570 = vpop.f32.mrb[0].mxu0
      %v571 = vadd.f32 0.0, %v570
      %v572 = vpop.f32.mrb[0].mxu0
      %573 = vmatprep.mubr.bf16.mxu0 0
      %574 = vmatmul.mubr.bf16.gmra.mrb[0].mxu0 %v457
      %v575 = vpop.f32.mrb[0].mxu0
      %v576 = vadd.f32 0.0, %v575
      %v577 = vpop.f32.mrb[0].mxu0
      %v578 = vpop.f32.mrb[0].mxu0
      %v579 = vadd.f32 0.0, %v578
      %v580 = vpop.f32.mrb[0].mxu0
      %581 = vmatprep.mubr.bf16.mxu0 0
      %582 = vmatmul.mubr.bf16.gmra.mrb[0].mxu0 %v460
      %v583 = vpop.f32.mrb[0].mxu0
      %v584 = vadd.f32 0.0, %v583
      %v585 = vpop.f32.mrb[0].mxu0
      %v586 = vpop.f32.mrb[0].mxu0
      %v587 = vadd.f32 0.0, %v586
      %v588 = vpop.f32.mrb[0].mxu0
      %589 = vmatprep.mubr.bf16.mxu0 0
      %590 = vmatmul.mubr.bf16.gmra.mrb[0].mxu0 %v463
      %v591 = vpop.f32.mrb[0].mxu0
      %v592 = vadd.f32 0.0, %v591
      %v593 = vpop.f32.mrb[0].mxu0
      %v594 = vpop.f32.mrb[0].mxu0
      %v595 = vadd.f32 0.0, %v594
      %v596 = vpop.f32.mrb[0].mxu0
      %597 = vmatprep.mubr.bf16.mxu0 0
      %598 = vmatmul.mubr.bf16.gmra.mrb[0].mxu0 %v466
      %v599 = vpop.f32.mrb[0].mxu0
      %v600 = vadd.f32 0.0, %v599
      %v601 = vpop.f32.mrb[0].mxu0
      %v602 = vpop.f32.mrb[0].mxu0
      %v603 = vadd.f32 0.0, %v602
      %v604 = vpop.f32.mrb[0].mxu0
      %605 = vmatprep.mubr.bf16.mxu0 0
      %606 = vmatmul.mubr.bf16.gmra.mrb[0].mxu0 %v469
      %v607 = vpop.f32.mrb[0].mxu0
      %v608 = vadd.f32 0.0, %v607
      %v609 = vpop.f32.mrb[0].mxu0
      %v610 = vpop.f32.mrb[0].mxu0
      %v611 = vadd.f32 0.0, %v610
      %v612 = vpop.f32.mrb[0].mxu0
      %613 = vmatprep.mubr.bf16.mxu0 0
      %614 = vmatmul.mubr.bf16.gmra.mrb[0].mxu0 %v472
      %v615 = vpop.f32.mrb[0].mxu0
      %v616 = vadd.f32 0.0, %v615
      %v617 = vpop.f32.mrb[0].mxu0
      %v618 = vpop.f32.mrb[0].mxu0
      %v619 = vadd.f32 0.0, %v618
      %v620 = vpop.f32.mrb[0].mxu0
      %621 = vmatprep.mubr.bf16.mxu0 0
      %622 = vmatmul.mubr.bf16.gmra.mrb[0].mxu0 %v475
      %v623 = vpop.f32.mrb[0].mxu0
      %v624 = vadd.f32 0.0, %v623
      %v625 = vpop.f32.mrb[0].mxu0
      %v626 = vpop.f32.mrb[0].mxu0
      %v627 = vadd.f32 0.0, %v626
      %v628 = vpop.f32.mrb[0].mxu0
      %629 = vmatprep.mubr.bf16.mxu0 0
      %630 = vmatmul.mubr.bf16.gmra.mrb[0].mxu0 %v478
      %v631 = vpop.f32.mrb[0].mxu0
      %v632 = vadd.f32 0.0, %v631
      %v633 = vpop.f32.mrb[0].mxu0
      %v634 = vpop.f32.mrb[0].mxu0
      %v635 = vadd.f32 0.0, %v634
      %v636 = vpop.f32.mrb[0].mxu0
      %637 = vmatprep.mubr.bf16.mxu0 0
      %638 = vmatmul.mubr.bf16.gmra.mrb[0].mxu0 %v481
      %v639 = vpop.f32.mrb[0].mxu0
      %v640 = vadd.f32 0.0, %v639
      %v641 = vpop.f32.mrb[0].mxu0
      %v642 = vpop.f32.mrb[0].mxu0
      %v643 = vadd.f32 0.0, %v642
      %v644 = vpop.f32.mrb[0].mxu0
      %645 = vmatprep.mubr.bf16.mxu0 0
      %646 = vmatmul.mubr.bf16.gmra.mrb[0].mxu0 %v484
      %v647 = vpop.f32.mrb[0].mxu0
      %v648 = vadd.f32 0.0, %v647
      %v649 = vpop.f32.mrb[0].mxu0
      %v650 = vpop.f32.mrb[0].mxu0
      %v651 = vadd.f32 0.0, %v650
      %v652 = vpop.f32.mrb[0].mxu0
      %653 = vdwg.mxu0
      %v654 = vadd.f32 %v292, %v528
      %v655 = vadd.f32 %v293, %v531
      %v656 = vadd.f32 %v294, %v536
      %v657 = vadd.f32 %v295, %v539
      %v658 = vadd.f32 %v296, %v544
      %v659 = vadd.f32 %v297, %v547
      %v660 = vadd.f32 %v298, %v552
      %v661 = vadd.f32 %v299, %v555
      %v662 = vadd.f32 %v300, %v560
      %v663 = vadd.f32 %v301, %v563
      %v664 = vadd.f32 %v302, %v568
      %v665 = vadd.f32 %v303, %v571
      %v666 = vadd.f32 %v304, %v576
      %v667 = vadd.f32 %v305, %v579
      %v668 = vadd.f32 %v306, %v584
      %v669 = vadd.f32 %v307, %v587
      %v670 = vadd.f32 %v308, %v592
      %v671 = vadd.f32 %v309, %v595
      %v672 = vadd.f32 %v310, %v600
      %v673 = vadd.f32 %v311, %v603
      %v674 = vadd.f32 %v312, %v608
      %v675 = vadd.f32 %v313, %v611
      %v676 = vadd.f32 %v314, %v616
      %v677 = vadd.f32 %v315, %v619
      %v678 = vadd.f32 %v316, %v624
      %v679 = vadd.f32 %v317, %v627
      %v680 = vadd.f32 %v318, %v632
      %v681 = vadd.f32 %v319, %v635
      %v682 = vadd.f32 %v320, %v640
      %v683 = vadd.f32 %v321, %v643
      %v684 = vadd.f32 %v322, %v648
      %v685 = vadd.f32 %v323, %v651
      %vm686 = vcmask 392192
      %687 = vst.msk [vmem:[#allocation2] sm:$0xff] %vm686, %v654
      %688 = vst.msk [vmem:[#allocation2 + $0x8] sm:$0xff] %vm686, %v655
      %689 = vst.msk [vmem:[#allocation2 + $0x10] sm:$0xff] %vm686, %v656
      %690 = vst.msk [vmem:[#allocation2 + $0x18] sm:$0xff] %vm686, %v657
      %691 = vst.msk [vmem:[#allocation2 + $0x20] sm:$0xff] %vm686, %v658
      %692 = vst.msk [vmem:[#allocation2 + $0x28] sm:$0xff] %vm686, %v659
      %693 = vst.msk [vmem:[#allocation2 + $0x30] sm:$0xff] %vm686, %v660
      %694 = vst.msk [vmem:[#allocation2 + $0x38] sm:$0xff] %vm686, %v661
      %695 = vst.msk [vmem:[#allocation2 + $0x40] sm:$0xff] %vm686, %v662
      %696 = vst.msk [vmem:[#allocation2 + $0x48] sm:$0xff] %vm686, %v663
      %697 = vst.msk [vmem:[#allocation2 + $0x50] sm:$0xff] %vm686, %v664
      %698 = vst.msk [vmem:[#allocation2 + $0x58] sm:$0xff] %vm686, %v665
      %699 = vst.msk [vmem:[#allocation2 + $0x60] sm:$0xff] %vm686, %v666
      %700 = vst.msk [vmem:[#allocation2 + $0x68] sm:$0xff] %vm686, %v667
      %701 = vst.msk [vmem:[#allocation2 + $0x70] sm:$0xff] %vm686, %v668
      %702 = vst.msk [vmem:[#allocation2 + $0x78] sm:$0xff] %vm686, %v669
      %703 = vst.msk [vmem:[#allocation2 + $0x80] sm:$0xff] %vm686, %v670
      %704 = vst.msk [vmem:[#allocation2 + $0x88] sm:$0xff] %vm686, %v671
      %705 = vst.msk [vmem:[#allocation2 + $0x90] sm:$0xff] %vm686, %v672
      %706 = vst.msk [vmem:[#allocation2 + $0x98] sm:$0xff] %vm686, %v673
      %707 = vst.msk [vmem:[#allocation2 + $0xa0] sm:$0xff] %vm686, %v674
      %708 = vst.msk [vmem:[#allocation2 + $0xa8] sm:$0xff] %vm686, %v675
      %709 = vst.msk [vmem:[#allocation2 + $0xb0] sm:$0xff] %vm686, %v676
      %710 = vst.msk [vmem:[#allocation2 + $0xb8] sm:$0xff] %vm686, %v677
      %711 = vst.msk [vmem:[#allocation2 + $0xc0] sm:$0xff] %vm686, %v678
      %712 = vst.msk [vmem:[#allocation2 + $0xc8] sm:$0xff] %vm686, %v679
      %713 = vst.msk [vmem:[#allocation2 + $0xd0] sm:$0xff] %vm686, %v680
      %714 = vst.msk [vmem:[#allocation2 + $0xd8] sm:$0xff] %vm686, %v681
      %715 = vst.msk [vmem:[#allocation2 + $0xe0] sm:$0xff] %vm686, %v682
      %716 = vst.msk [vmem:[#allocation2 + $0xe8] sm:$0xff] %vm686, %v683
      %717 = vst.msk [vmem:[#allocation2 + $0xf0] sm:$0xff] %vm686, %v684
      %718 = vst.msk [vmem:[#allocation2 + $0xf8] sm:$0xff] %vm686, %v685
      // Predicated region
      $region37: #{tpu_custom_call.1} parent=31 // pred_check
        %p719 = pneg %p255
      $region38: #{tpu_custom_call.1} parent=31 // pred_check_branch
        %721 = sbr.rel (%p719) target = $region40
      $region39: #{tpu_custom_call.1} parent=31 // pred_region
        %v722 = vld [vmem:[#allocation2] sm:$0xff]
        %v723 = vld [vmem:[#allocation2 + $0x8] sm:$0xff]
        %v724 = vld [vmem:[#allocation2 + $0x10] sm:$0xff]
        %v725 = vld [vmem:[#allocation2 + $0x18] sm:$0xff]
        %v726 = vld [vmem:[#allocation2 + $0x20] sm:$0xff]
        %v727 = vld [vmem:[#allocation2 + $0x28] sm:$0xff]
        %v728 = vld [vmem:[#allocation2 + $0x30] sm:$0xff]
        %v729 = vld [vmem:[#allocation2 + $0x38] sm:$0xff]
        %v730 = vld [vmem:[#allocation2 + $0x40] sm:$0xff]
        %v731 = vld [vmem:[#allocation2 + $0x48] sm:$0xff]
        %v732 = vld [vmem:[#allocation2 + $0x50] sm:$0xff]
        %v733 = vld [vmem:[#allocation2 + $0x58] sm:$0xff]
        %v734 = vld [vmem:[#allocation2 + $0x60] sm:$0xff]
        %v735 = vld [vmem:[#allocation2 + $0x68] sm:$0xff]
        %v736 = vld [vmem:[#allocation2 + $0x70] sm:$0xff]
        %v737 = vld [vmem:[#allocation2 + $0x78] sm:$0xff]
        %v738 = vld [vmem:[#allocation2 + $0x80] sm:$0xff]
        %v739 = vld [vmem:[#allocation2 + $0x88] sm:$0xff]
        %v740 = vld [vmem:[#allocation2 + $0x90] sm:$0xff]
        %v741 = vld [vmem:[#allocation2 + $0x98] sm:$0xff]
        %v742 = vld [vmem:[#allocation2 + $0xa0] sm:$0xff]
        %v743 = vld [vmem:[#allocation2 + $0xa8] sm:$0xff]
        %v744 = vld [vmem:[#allocation2 + $0xb0] sm:$0xff]
        %v745 = vld [vmem:[#allocation2 + $0xb8] sm:$0xff]
        %v746 = vld [vmem:[#allocation2 + $0xc0] sm:$0xff]
        %v747 = vld [vmem:[#allocation2 + $0xc8] sm:$0xff]
        %v748 = vld [vmem:[#allocation2 + $0xd0] sm:$0xff]
        %v749 = vld [vmem:[#allocation2 + $0xd8] sm:$0xff]
        %v750 = vld [vmem:[#allocation2 + $0xe0] sm:$0xff]
        %v751 = vld [vmem:[#allocation2 + $0xe8] sm:$0xff]
        %v752 = vld [vmem:[#allocation2 + $0xf0] sm:$0xff]
        %v753 = vld [vmem:[#allocation2 + $0xf8] sm:$0xff]
        %v754 = vld [vmem:[%s244] sm:$0x1]
        %v755 = vunpack.c.l.bf16 %v754
        %v756 = vlaneseq
        %v757 = vshrl.u32 %v756, 7
        %v758 = vsub.s32 0, %v757
        %v759 = vrot.slane %v755, %v758
        %v760 = vadd.f32 %v722, %v759
        %v761 = vadd.f32 %v723, %v759
        %v762 = vadd.f32 %v724, %v759
        %v763 = vadd.f32 %v725, %v759
        %v764 = vadd.f32 %v726, %v759
        %v765 = vadd.f32 %v727, %v759
        %v766 = vadd.f32 %v728, %v759
        %v767 = vadd.f32 %v729, %v759
        %v768 = vadd.f32 %v730, %v759
        %v769 = vadd.f32 %v731, %v759
        %v770 = vadd.f32 %v732, %v759
        %v771 = vadd.f32 %v733, %v759
        %v772 = vadd.f32 %v734, %v759
        %v773 = vadd.f32 %v735, %v759
        %v774 = vadd.f32 %v736, %v759
        %v775 = vadd.f32 %v737, %v759
        %v776 = vadd.f32 %v738, %v759
        %v777 = vadd.f32 %v739, %v759
        %v778 = vadd.f32 %v740, %v759
        %v779 = vadd.f32 %v741, %v759
        %v780 = vadd.f32 %v742, %v759
        %v781 = vadd.f32 %v743, %v759
        %v782 = vadd.f32 %v744, %v759
        %v783 = vadd.f32 %v745, %v759
        %v784 = vadd.f32 %v746, %v759
        %v785 = vadd.f32 %v747, %v759
        %v786 = vadd.f32 %v748, %v759
        %v787 = vadd.f32 %v749, %v759
        %v788 = vadd.f32 %v750, %v759
        %v789 = vadd.f32 %v751, %v759
        %v790 = vadd.f32 %v752, %v759
        %v791 = vadd.f32 %v753, %v759
        %v792 = vpack.c.bf16 %v761, %v760
        %v793 = vpack.c.bf16 %v763, %v762
        %v794 = vpack.c.bf16 %v765, %v764
        %v795 = vpack.c.bf16 %v767, %v766
        %v796 = vpack.c.bf16 %v769, %v768
        %v797 = vpack.c.bf16 %v771, %v770
        %v798 = vpack.c.bf16 %v773, %v772
        %v799 = vpack.c.bf16 %v775, %v774
        %v800 = vpack.c.bf16 %v777, %v776
        %v801 = vpack.c.bf16 %v779, %v778
        %v802 = vpack.c.bf16 %v781, %v780
        %v803 = vpack.c.bf16 %v783, %v782
        %v804 = vpack.c.bf16 %v785, %v784
        %v805 = vpack.c.bf16 %v787, %v786
        %v806 = vpack.c.bf16 %v789, %v788
        %v807 = vpack.c.bf16 %v791, %v790
        %v824 = vunpack.c.l.b16 %v792
        %v825 = vunpack.c.h.b16 %v792
        %v826 = vunpack.c.l.b16 %v793
        %v827 = vunpack.c.h.b16 %v793
        %v828 = vunpack.c.l.b16 %v794
        %v829 = vunpack.c.h.b16 %v794
        %v830 = vunpack.c.l.b16 %v795
        %v831 = vunpack.c.h.b16 %v795
        %v832 = vunpack.c.l.b16 %v796
        %v833 = vunpack.c.h.b16 %v796
        %v834 = vunpack.c.l.b16 %v797
        %v835 = vunpack.c.h.b16 %v797
        %v836 = vunpack.c.l.b16 %v798
        %v837 = vunpack.c.h.b16 %v798
        %v838 = vunpack.c.l.b16 %v799
        %v839 = vunpack.c.h.b16 %v799
        %v840 = vunpack.c.l.b16 %v800
        %v841 = vunpack.c.h.b16 %v800
        %v842 = vunpack.c.l.b16 %v801
        %v843 = vunpack.c.h.b16 %v801
        %v844 = vunpack.c.l.b16 %v802
        %v845 = vunpack.c.h.b16 %v802
        %v846 = vunpack.c.l.b16 %v803
        %v847 = vunpack.c.h.b16 %v803
        %v848 = vunpack.c.l.b16 %v804
        %v849 = vunpack.c.h.b16 %v804
        %v850 = vunpack.c.l.b16 %v805
        %v851 = vunpack.c.h.b16 %v805
        %v852 = vunpack.c.l.b16 %v806
        %v853 = vunpack.c.h.b16 %v806
        %v854 = vunpack.c.l.b16 %v807
        %v855 = vunpack.c.h.b16 %v807
        %v856 = vpack.c.b16 %v824, %v824
        %v857 = vpack.c.b16 %v825, %v825
        %v858 = vpack.c.b16 %v826, %v826
        %v859 = vpack.c.b16 %v827, %v827
        %v860 = vpack.c.b16 %v828, %v828
        %v861 = vpack.c.b16 %v829, %v829
        %v862 = vpack.c.b16 %v830, %v830
        %v863 = vpack.c.b16 %v831, %v831
        %v864 = vpack.c.b16 %v832, %v832
        %v865 = vpack.c.b16 %v833, %v833
        %v866 = vpack.c.b16 %v834, %v834
        %v867 = vpack.c.b16 %v835, %v835
        %v868 = vpack.c.b16 %v836, %v836
        %v869 = vpack.c.b16 %v837, %v837
        %v870 = vpack.c.b16 %v838, %v838
        %v871 = vpack.c.b16 %v839, %v839
        %v872 = vpack.c.b16 %v840, %v840
        %v873 = vpack.c.b16 %v841, %v841
        %v874 = vpack.c.b16 %v842, %v842
        %v875 = vpack.c.b16 %v843, %v843
        %v876 = vpack.c.b16 %v844, %v844
        %v877 = vpack.c.b16 %v845, %v845
        %v878 = vpack.c.b16 %v846, %v846
        %v879 = vpack.c.b16 %v847, %v847
        %v880 = vpack.c.b16 %v848, %v848
        %v881 = vpack.c.b16 %v849, %v849
        %v882 = vpack.c.b16 %v850, %v850
        %v883 = vpack.c.b16 %v851, %v851
        %v884 = vpack.c.b16 %v852, %v852
        %v885 = vpack.c.b16 %v853, %v853
        %v886 = vpack.c.b16 %v854, %v854
        %v887 = vpack.c.b16 %v855, %v855
        %vm920 = vcmask 388096
        %921 = vst.msk [vmem:[%s252] sm:$0xf] %vm920, %v856
        %922 = vst.msk [vmem:[%s252 + $0x4] sm:$0xf] %vm920, %v857
        %923 = vst.msk [vmem:[%s252 + $0x8] sm:$0xf] %vm920, %v858
        %924 = vst.msk [vmem:[%s252 + $0xc] sm:$0xf] %vm920, %v859
        %925 = vst.msk [vmem:[%s252 + $0x10] sm:$0xf] %vm920, %v860
        %926 = vst.msk [vmem:[%s252 + $0x14] sm:$0xf] %vm920, %v861
        %927 = vst.msk [vmem:[%s252 + $0x18] sm:$0xf] %vm920, %v862
        %928 = vst.msk [vmem:[%s252 + $0x1c] sm:$0xf] %vm920, %v863
        %929 = vst.msk [vmem:[%s252 + $0x20] sm:$0xf] %vm920, %v864
        %930 = vst.msk [vmem:[%s252 + $0x24] sm:$0xf] %vm920, %v865
        %931 = vst.msk [vmem:[%s252 + $0x28] sm:$0xf] %vm920, %v866
        %932 = vst.msk [vmem:[%s252 + $0x2c] sm:$0xf] %vm920, %v867
        %933 = vst.msk [vmem:[%s252 + $0x30] sm:$0xf] %vm920, %v868
        %934 = vst.msk [vmem:[%s252 + $0x34] sm:$0xf] %vm920, %v869
        %935 = vst.msk [vmem:[%s252 + $0x38] sm:$0xf] %vm920, %v870
        %936 = vst.msk [vmem:[%s252 + $0x3c] sm:$0xf] %vm920, %v871
        %937 = vst.msk [vmem:[%s252 + $0x40] sm:$0xf] %vm920, %v872
        %938 = vst.msk [vmem:[%s252 + $0x44] sm:$0xf] %vm920, %v873
        %939 = vst.msk [vmem:[%s252 + $0x48] sm:$0xf] %vm920, %v874
        %940 = vst.msk [vmem:[%s252 + $0x4c] sm:$0xf] %vm920, %v875
        %941 = vst.msk [vmem:[%s252 + $0x50] sm:$0xf] %vm920, %v876
        %942 = vst.msk [vmem:[%s252 + $0x54] sm:$0xf] %vm920, %v877
        %943 = vst.msk [vmem:[%s252 + $0x58] sm:$0xf] %vm920, %v878
        %944 = vst.msk [vmem:[%s252 + $0x5c] sm:$0xf] %vm920, %v879
        %945 = vst.msk [vmem:[%s252 + $0x60] sm:$0xf] %vm920, %v880
        %946 = vst.msk [vmem:[%s252 + $0x64] sm:$0xf] %vm920, %v881
        %947 = vst.msk [vmem:[%s252 + $0x68] sm:$0xf] %vm920, %v882
        %948 = vst.msk [vmem:[%s252 + $0x6c] sm:$0xf] %vm920, %v883
        %949 = vst.msk [vmem:[%s252 + $0x70] sm:$0xf] %vm920, %v884
        %950 = vst.msk [vmem:[%s252 + $0x74] sm:$0xf] %vm920, %v885
        %951 = vst.msk [vmem:[%s252 + $0x78] sm:$0xf] %vm920, %v886
        %952 = vst.msk [vmem:[%s252 + $0x7c] sm:$0xf] %vm920, %v887
      $region40: #{tpu_custom_call.1} parent=31 // pred_fallthru
        _
      %s953 = smul.u32 32, %s19
      %p954 = scmp.lt.s32.totalorder %s953, 127
      %s955 = scalar_select %p954, %s953, 127
      %p956 = scmp.lt.s32.totalorder %s20, 0
      %s957 = scalar_select %p956, %s20, 0
      %s958 = sadd.s32 %s957, %s955
      %s959 = smul.addr %s958, 4
      %s960 = scalar_lea.vmem %s3, %s959
      // Predicated region
      $region41: #{tpu_custom_call.1} parent=31 // pred_check
        %p961 = pneg %p135
      $region42: #{tpu_custom_call.1} parent=31 // pred_check_branch
        %963 = sbr.rel (%p961) target = $region44
      $region43: #{tpu_custom_call.1} parent=31 // pred_region
        %s964 = smul.u32 32, %s19
      $region44: #{tpu_custom_call.1} parent=31 // pred_fallthru
        _
    $region32: #{tpu_custom_call.1} parent=5 // pred_fallthru
      _
    %p965 = scmp.le.s32.totalorder 2, %s9
    // Predicated region
    $region45: #{tpu_custom_call.1} parent=5 // pred_check
      %p966 = pneg %p965
    $region46: #{tpu_custom_call.1} parent=5 // pred_check_branch
      %968 = sbr.rel (%p966) target = $region48
    $region47: #{tpu_custom_call.1} parent=5 // pred_region
      %s969 = ssub.s32 %s9, 2
      // Predicated region
      $region49: #{tpu_custom_call.1} parent=47 // pred_check
        %p970 = pneg %p141
      $region50: #{tpu_custom_call.1} parent=47 // pred_check_branch
        %972 = sbr.rel (%p970) target = $region52
      $region51: #{tpu_custom_call.1} parent=47 // pred_region
        %s973 = smul.u32 32, %s22
        %p974 = scmp.lt.s32.totalorder %s973, 127
        %s975 = scalar_select %p974, %s973, 127
        %p976 = scmp.lt.s32.totalorder %s23, 0
        %s977 = scalar_select %p976, %s23, 0
        %s978 = sadd.s32 %s977, %s975
        %s979 = smul.addr %s978, 4
        %s980 = scalar_lea.vmem %s3, %s979
      $region52: #{tpu_custom_call.1} parent=47 // pred_fallthru
        _
    $region48: #{tpu_custom_call.1} parent=5 // pred_fallthru
      _
  $region6: #{tpu_custom_call.1} parent=0 // loop_footer
    %s13 = sadd.s32 1, %s9
  $region7: #{tpu_custom_call.1} parent=0 // loop_footer_branch
    %8 = sbr.rel target = $region3
  $region8: #{tpu_custom_call.1} parent=0 // loop_exit
    _

</llo_original>
